<compile_context>
chip_gen: v5e
topology: v5e:2x2
jax: 0.10.0
libtpu: 0.0.40
codegen_flags: <defaults>
</compile_context>

<pallas_src>
import math
import jax
import jax.numpy as jnp
from jax.experimental import pallas as pl
from jax.experimental.pallas import tpu as pltpu

# ---- configuration mirroring the module's `settings` / `tools` values ----
SEQUENCE_SIZE = 16          # settings.sequenceSize  (convLin)
PRES_CHANNELS = 4           # tools.getNumSensors('p')
NUM_CLASSES   = 3           # settings.numClasses
OUT_CHANNELS  = 3
KERNEL_SIZE   = 6
STRIDE, PADDING, DILATION = 1, 0, 1

CONV_L_OUT = (SEQUENCE_SIZE + 2 * PADDING - DILATION * (KERNEL_SIZE - 1) - 1) // STRIDE + 1   # 11
POOL_L_OUT = (CONV_L_OUT + 2 * PADDING - DILATION * (KERNEL_SIZE - 1) - 1) // STRIDE + 1      # 6
DECODER_IN = POOL_L_OUT * OUT_CHANNELS                                                        # 18

C_IN_FLAT = PRES_CHANNELS * SEQUENCE_SIZE      # 64  (flattened input features, row = c*L + s)
CONV_FLAT = OUT_CHANNELS * CONV_L_OUT          # 33  (flattened conv output,   row = o*Lout + l)
POOL_W    = CONV_FLAT - (KERNEL_SIZE - 1)      # 28  (sliding-max window height on the flat layout)

LANE = 128                                     # lane width; batch tiles are multiples of this


def cnn_kernel(x_ref, wconv_ref, bconv_ref, wdec_ref, bdec_ref, out_ref):
    """Fused conv1d + ReLU + maxpool1d + linear + sigmoid on one batch-in-lanes tile.

    x_ref     : (64, tb)  bfloat16  feature-major input, row = c*seq + s, lanes = batch
    wconv_ref : (33, 64)  bfloat16  dense conv matrix (conv is linear)
    bconv_ref : (33, 1)   float32   conv bias per flat conv row (broadcast over lanes)
    wdec_ref  : (3, 28)   bfloat16  decoder matrix on the flat pooled layout (invalid cols = 0)
    bdec_ref  : (3, 1)    float32
    out_ref   : (3, tb)   float32   lane-dense output tile
    """
    # --- Conv1d as one MXU matmul (bf16 x bf16 -> f32 accumulation) ---
    conv = jnp.dot(wconv_ref[...], x_ref[...], preferred_element_type=jnp.float32)
    # --- bias + ReLU (lane-dense VPU work) ---
    relu = jnp.maximum(conv + bconv_ref[...], 0.0)                     # (33, tb)

    # --- MaxPool1d(6, stride=1) via sliding max over sublane-offset slices ---
    # pooled[o*Lout + p, :] == max_k relu[o*Lout + p + k, :] for p < Lpool (windows never cross
    # a channel boundary since p+k <= 10 < Lout); other rows are dropped by wdec (zero columns).
    pooled = relu[0:POOL_W, :]
    for k in range(1, KERNEL_SIZE):
        pooled = jnp.maximum(pooled, relu[k:k + POOL_W, :])            # (28, tb)

    # --- Linear decoder (small bf16 matmul, f32 acc) + Sigmoid (EUP exp + approx reciprocal) ---
    z = jnp.dot(wdec_ref[...], pooled.astype(jnp.bfloat16),
                preferred_element_type=jnp.float32) + bdec_ref[...]     # (3, tb)
    out_ref[...] = pl.reciprocal(1.0 + jnp.exp(-z), approx=True).astype(out_ref.dtype)


# ---------------------------------------------------------------------------
# Parameter packing (plain-JAX glue, done once in the wrapper)
# ---------------------------------------------------------------------------
def _conv_as_matrix(wconv):
    """(33, 64) matrix M with (M @ x_fm)[o*Lout + l, b] == conv1d(x)[b, o, l]."""
    oi, ci, ki, li = jnp.meshgrid(jnp.arange(OUT_CHANNELS), jnp.arange(PRES_CHANNELS),
                                  jnp.arange(KERNEL_SIZE), jnp.arange(CONV_L_OUT), indexing="ij")
    rows = (oi * CONV_L_OUT + li).ravel()                  # conv flat row  o*Lout + l
    cols = (ci * SEQUENCE_SIZE + li + ki).ravel()          # x_fm row       c*L + (l + k)
    vals = jnp.broadcast_to(
        wconv[:, :, :, None],
        (OUT_CHANNELS, PRES_CHANNELS, KERNEL_SIZE, CONV_L_OUT)).ravel()
    return jnp.zeros((CONV_FLAT, C_IN_FLAT), jnp.float32).at[rows, cols].set(vals)


def _dec_as_matrix(wdec):
    """(3, 28) decoder matrix on the flat pooled layout: column o*Lout + p carries W[n, o*Lpool + p]."""
    oi, pi, ni = jnp.meshgrid(jnp.arange(OUT_CHANNELS), jnp.arange(POOL_L_OUT),
                              jnp.arange(NUM_CLASSES), indexing="ij")
    rows = ni.ravel()
    cols = (oi * CONV_L_OUT + pi).ravel()
    vals = wdec[ni.ravel(), (oi * POOL_L_OUT + pi).ravel()]
    return jnp.zeros((NUM_CLASSES, POOL_W), jnp.float32).at[rows, cols].set(vals)


def init_params(key):
    """Deterministic parameter init matching the module's shapes."""
    k1, k2, k3, k4 = jax.random.split(key, 4)
    fan_conv = PRES_CHANNELS * KERNEL_SIZE
    wconv = jax.random.uniform(k1, (OUT_CHANNELS, PRES_CHANNELS, KERNEL_SIZE),
                               jnp.float32, -1.0, 1.0) / math.sqrt(fan_conv)
    bconv = jax.random.uniform(k2, (OUT_CHANNELS,), jnp.float32, -1.0, 1.0) / math.sqrt(fan_conv)
    wdec = jax.random.uniform(k3, (NUM_CLASSES, DECODER_IN),
                              jnp.float32, -1.0, 1.0) / math.sqrt(DECODER_IN)
    bdec = jax.random.uniform(k4, (NUM_CLASSES,), jnp.float32, -1.0, 1.0) / math.sqrt(DECODER_IN)
    return wconv, bconv, wdec, bdec


def _round_up(x, m):
    return ((x + m - 1) // m) * m


def _pick_batch_tile(batch, block_b):
    """Lane-aligned batch tile; >= 2 grid steps for large batches (v7x has 2 TensorCores)."""
    target = max((batch + 1) // 2, LANE)
    return _round_up(min(block_b, target), LANE)


def pack_params(params):
    """Kernel-friendly parameter layouts (build once, reuse across calls)."""
    wconv, bconv, wdec, bdec = params
    wconv_mat = _conv_as_matrix(wconv.astype(jnp.float32)).astype(jnp.bfloat16)   # (33, 64)
    bconv_col = jnp.repeat(bconv.astype(jnp.float32), CONV_L_OUT).reshape(CONV_FLAT, 1)
    wdec_mat  = _dec_as_matrix(wdec.astype(jnp.float32)).astype(jnp.bfloat16)     # (3, 28)
    bdec_col  = bdec.astype(jnp.float32).reshape(NUM_CLASSES, 1)
    return wconv_mat, bconv_col, wdec_mat, bdec_col


def pack_input(pres_inp):
    """Raw torch-layout input (seq, batch, presC) -> feature-major bf16 (64, batch).

    Row index = c*seq + s, matching the conv matrix. Ideally a producer emits this layout
    directly (see cnn_forward_packed) so no extra HBM pass is spent on the transpose.
    """
    return jnp.transpose(pres_inp, (2, 0, 1)).reshape(C_IN_FLAT, -1).astype(jnp.bfloat16)


def cnn_forward_packed(x_fm, packed_params, *, block_b=8192):
    """Run the fused kernel on an already-packed feature-major bf16 input (64, batch)."""
    wconv_mat, bconv_col, wdec_mat, bdec_col = packed_params
    batch = x_fm.shape[1]

    tb = _pick_batch_tile(batch, block_b)
    padded = _round_up(batch, tb)
    if padded != batch:
        x_fm = jnp.pad(x_fm, ((0, 0), (0, padded - batch)))
    grid = (padded // tb,)

    out = pl.pallas_call(
        cnn_kernel,
        out_shape=jax.ShapeDtypeStruct((NUM_CLASSES, padded), jnp.float32),
        grid=grid,
        in_specs=[
            pl.BlockSpec((C_IN_FLAT, tb), lambda i: (0, i)),             # batch-tiled input
            pl.BlockSpec((CONV_FLAT, C_IN_FLAT), lambda i: (0, 0)),      # VMEM-resident weights
            pl.BlockSpec((CONV_FLAT, 1), lambda i: (0, 0)),
            pl.BlockSpec((NUM_CLASSES, POOL_W), lambda i: (0, 0)),
            pl.BlockSpec((NUM_CLASSES, 1), lambda i: (0, 0)),
        ],
        out_specs=pl.BlockSpec((NUM_CLASSES, tb), lambda i: (0, i)),     # lane-dense output
        compiler_params=pltpu.CompilerParams(
            dimension_semantics=("parallel",),       # megacore sharding of the batch axis (v7x)
        ),
    )(x_fm, wconv_mat, bconv_col, wdec_mat, bdec_col)

    # torch output shape: (batch, 1, numClasses)
    return jnp.transpose(out[:, :batch]).reshape(batch, 1, NUM_CLASSES)


def cnn_forward(inp, params, *, block_b=8192):
    """inp = (presInp, flowInp) with presInp: (seq, batch, presChannels). flowInp is unused."""
    pres_inp, _flow_inp = inp    # flowInp is transposed in torch but never consumed
    x_fm = pack_input(pres_inp)  # single fused transpose+cast pass (see cnn_forward_packed)
    return cnn_forward_packed(x_fm, pack_params(params), block_b=block_b)


def cnn_forward_reference(inp, params):
    """Pure-JAX (f32) reference matching the PyTorch forward exactly."""
    pres_inp, _ = inp
    wconv, bconv, wdec, bdec = params
    x = jnp.transpose(pres_inp, (1, 2, 0)).astype(jnp.float32)   # (B, Cin, L)
    conv = jax.lax.conv_general_dilated(
        x, wconv.astype(jnp.float32), window_strides=(1,), padding="VALID",
        dimension_numbers=("NCH", "OIH", "NCH"))
    conv = conv + bconv[None, :, None]
    relu = jnp.maximum(conv, 0.0)
    pooled = relu[:, :, 0:POOL_L_OUT]
    for k in range(1, KERNEL_SIZE):
        pooled = jnp.maximum(pooled, relu[:, :, k:k + POOL_L_OUT])
    flat = pooled.reshape(x.shape[0], DECODER_IN)
    z = flat @ wdec.T + bdec
    return jax.nn.sigmoid(z).reshape(x.shape[0], 1, NUM_CLASSES)


if __name__ == "__main__":
    key = jax.random.PRNGKey(0)
    k_inp, k_flow, k_par = jax.random.split(key, 3)

    batch = 2
    # Raw module inputs (before the torch transposes): (seq, batch, channels)
    pres_inp = jax.random.normal(k_inp, (SEQUENCE_SIZE, batch, PRES_CHANNELS), jnp.float32)
    flow_inp = jax.random.normal(k_flow, (SEQUENCE_SIZE, batch, PRES_CHANNELS), jnp.float32)  # unused

    params = init_params(k_par)

    out = cnn_forward((pres_inp, flow_inp), params)
    out = jax.block_until_ready(out)

    ref = jax.block_until_ready(cnn_forward_reference((pres_inp, flow_inp), params))
    assert out.shape == (batch, 1, NUM_CLASSES), out.shape
    # bf16 quantization of the input / conv / decoder weights -> slightly looser tolerance
    # than the f32 reference (intentional accuracy/bandwidth tradeoff).
    assert jnp.allclose(out, ref, atol=2e-2, rtol=0.0), (out, ref)

    print("KERNEL_OK")
</pallas_src>

<mosaic_0001>
module attributes {stable_mosaic.version = 11 : i64} {
  func.func @cnn_kernel(%arg0: i32, %arg1: memref<64x128xbf16, #tpu.memory_space<vmem>>, %arg2: memref<33x64xbf16, #tpu.memory_space<vmem>>, %arg3: memref<33x1xf32, #tpu.memory_space<vmem>>, %arg4: memref<3x28xbf16, #tpu.memory_space<vmem>>, %arg5: memref<3x1xf32, #tpu.memory_space<vmem>>, %arg6: memref<3x128xf32, #tpu.memory_space<vmem>>) attributes {dimension_semantics = [#tpu.dimension_semantics<parallel>], iteration_bounds = array<i64: 1>, scalar_prefetch = 0 : i64, scratch_operands = 0 : i64, tpu.core_type = #tpu.core_type<tc>, window_params = [{transform_indices = @transform_0, window_bounds = array<i64: 64, 128>}, {pipeline_mode = #tpu.pipeline_mode<synchronous>, transform_indices = @transform_1, window_bounds = array<i64: 33, 64>}, {pipeline_mode = #tpu.pipeline_mode<synchronous>, transform_indices = @transform_2, window_bounds = array<i64: 33, 1>}, {pipeline_mode = #tpu.pipeline_mode<synchronous>, transform_indices = @transform_3, window_bounds = array<i64: 3, 28>}, {pipeline_mode = #tpu.pipeline_mode<synchronous>, transform_indices = @transform_4, window_bounds = array<i64: 3, 1>}, {transform_indices = @transform_5, window_bounds = array<i64: 3, 128>}]} {
    %c0 = arith.constant 0 : index
    %c0_0 = arith.constant 0 : index
    %0 = vector.load %arg2[%c0, %c0_0] : memref<33x64xbf16, #tpu.memory_space<vmem>>, vector<33x64xbf16>
    %c0_1 = arith.constant 0 : index
    %c0_2 = arith.constant 0 : index
    %1 = vector.load %arg1[%c0_1, %c0_2] : memref<64x128xbf16, #tpu.memory_space<vmem>>, vector<64x128xbf16>
    %cst = arith.constant dense<0.000000e+00> : vector<33x128xf32>
    %2 = tpu.matmul %0, %1, %cst {dimension_numbers = #tpu.dot_dimension_numbers<[1], [0], [0], [1], [0, 0, 1, 1], [], []>} : vector<33x64xbf16>, vector<64x128xbf16>, vector<33x128xf32> -> vector<33x128xf32>
    %c0_3 = arith.constant 0 : index
    %c0_4 = arith.constant 0 : index
    %3 = vector.load %arg3[%c0_3, %c0_4] : memref<33x1xf32, #tpu.memory_space<vmem>>, vector<33x1xf32>
    %4 = vector.broadcast %3 : vector<33x1xf32> to vector<33x128xf32>
    %5 = arith.addf %2, %4 : vector<33x128xf32>
    %cst_5 = arith.constant 0.000000e+00 : f32
    %6 = vector.broadcast %cst_5 : f32 to vector<33x128xf32>
    %7 = arith.maximumf %5, %6 : vector<33x128xf32>
    %8 = vector.extract_strided_slice %7 {offsets = [0, 0], sizes = [28, 128], strides = [1, 1]} : vector<33x128xf32> to vector<28x128xf32>
    %9 = vector.extract_strided_slice %7 {offsets = [1, 0], sizes = [28, 128], strides = [1, 1]} : vector<33x128xf32> to vector<28x128xf32>
    %10 = arith.maximumf %8, %9 : vector<28x128xf32>
    %11 = vector.extract_strided_slice %7 {offsets = [2, 0], sizes = [28, 128], strides = [1, 1]} : vector<33x128xf32> to vector<28x128xf32>
    %12 = arith.maximumf %10, %11 : vector<28x128xf32>
    %13 = vector.extract_strided_slice %7 {offsets = [3, 0], sizes = [28, 128], strides = [1, 1]} : vector<33x128xf32> to vector<28x128xf32>
    %14 = arith.maximumf %12, %13 : vector<28x128xf32>
    %15 = vector.extract_strided_slice %7 {offsets = [4, 0], sizes = [28, 128], strides = [1, 1]} : vector<33x128xf32> to vector<28x128xf32>
    %16 = arith.maximumf %14, %15 : vector<28x128xf32>
    %17 = vector.extract_strided_slice %7 {offsets = [5, 0], sizes = [28, 128], strides = [1, 1]} : vector<33x128xf32> to vector<28x128xf32>
    %18 = arith.maximumf %16, %17 : vector<28x128xf32>
    %c0_6 = arith.constant 0 : index
    %c0_7 = arith.constant 0 : index
    %19 = vector.load %arg4[%c0_6, %c0_7] : memref<3x28xbf16, #tpu.memory_space<vmem>>, vector<3x28xbf16>
    %20 = arith.truncf %18 : vector<28x128xf32> to vector<28x128xbf16>
    %cst_8 = arith.constant dense<0.000000e+00> : vector<3x128xf32>
    %21 = tpu.matmul %19, %20, %cst_8 {dimension_numbers = #tpu.dot_dimension_numbers<[1], [0], [0], [1], [0, 0, 1, 1], [], []>} : vector<3x28xbf16>, vector<28x128xbf16>, vector<3x128xf32> -> vector<3x128xf32>
    %c0_9 = arith.constant 0 : index
    %c0_10 = arith.constant 0 : index
    %22 = vector.load %arg5[%c0_9, %c0_10] : memref<3x1xf32, #tpu.memory_space<vmem>>, vector<3x1xf32>
    %23 = vector.broadcast %22 : vector<3x1xf32> to vector<3x128xf32>
    %24 = arith.addf %21, %23 : vector<3x128xf32>
    %cst_11 = arith.constant 0.000000e+00 : f32
    %25 = vector.broadcast %cst_11 : f32 to vector<3x128xf32>
    %26 = arith.subf %25, %24 : vector<3x128xf32>
    %27 = math.exp %26 : vector<3x128xf32>
    %cst_12 = arith.constant 1.000000e+00 : f32
    %28 = vector.broadcast %cst_12 : f32 to vector<3x128xf32>
    %29 = arith.addf %28, %27 : vector<3x128xf32>
    %30 = tpu.reciprocal %29 {approx = true} : vector<3x128xf32> -> vector<3x128xf32>
    %c0_13 = arith.constant 0 : index
    %c0_14 = arith.constant 0 : index
    %31 = vector.load %arg6[%c0_13, %c0_14] : memref<3x128xf32, #tpu.memory_space<vmem>>, vector<3x128xf32>
    tpu.vector_store %arg6[%c0_13, %c0_14], %30 {strides = array<i32>} : memref<3x128xf32, #tpu.memory_space<vmem>>, vector<3x128xf32>,
    return
  }
  func.func @transform_0(%arg0: i32) -> (i32, i32) {
    %c0_i32 = arith.constant 0 : i32
    %c0_i32_0 = arith.constant 0 : i32
    return %c0_i32, %arg0 : i32, i32
  }
  func.func @transform_1(%arg0: i32) -> (i32, i32) {
    %c0_i32 = arith.constant 0 : i32
    %c0_i32_0 = arith.constant 0 : i32
    %c0_i32_1 = arith.constant 0 : i32
    return %c0_i32, %c0_i32_0 : i32, i32
  }
  func.func @transform_2(%arg0: i32) -> (i32, i32) {
    %c0_i32 = arith.constant 0 : i32
    %c0_i32_0 = arith.constant 0 : i32
    %c0_i32_1 = arith.constant 0 : i32
    return %c0_i32, %c0_i32_0 : i32, i32
  }
  func.func @transform_3(%arg0: i32) -> (i32, i32) {
    %c0_i32 = arith.constant 0 : i32
    %c0_i32_0 = arith.constant 0 : i32
    %c0_i32_1 = arith.constant 0 : i32
    return %c0_i32, %c0_i32_0 : i32, i32
  }
  func.func @transform_4(%arg0: i32) -> (i32, i32) {
    %c0_i32 = arith.constant 0 : i32
    %c0_i32_0 = arith.constant 0 : i32
    %c0_i32_1 = arith.constant 0 : i32
    return %c0_i32, %c0_i32_0 : i32, i32
  }
  func.func @transform_5(%arg0: i32) -> (i32, i32) {
    %c0_i32 = arith.constant 0 : i32
    %c0_i32_0 = arith.constant 0 : i32
    return %c0_i32, %arg0 : i32, i32
  }
}

</mosaic_0001>

<llo_original>
// kernel: tpu_custom_call.1
$region0: #{tpu_custom_call.1}
  #allocation0 [shape = 'u32[]', space=smem, size = 0x4, offset = 0x4, fixed_abs, tag = 'smem constant byte address 0x4 - core index']
  #allocation1 [shape = 'u32[72,128]{1,0:T(1,128)}', space=vmem, size = 0x9000, scoped, tag = 'internal scratch']
  %s0 = inlined_call_operand.vmem [shape: bf16[64,128], index: 0, kind: input, shape index: {}]
  %s1 = inlined_call_operand.hbm [shape: bf16[33,64], index: 1, kind: input, shape index: {}]
  %s2 = inlined_call_operand.vmem [shape: f32[33,1], index: 2, kind: input, shape index: {}]
  %s3 = inlined_call_operand.vmem [shape: bf16[3,28], index: 3, kind: input, shape index: {}]
  %s4 = inlined_call_operand.vmem [shape: f32[3,1], index: 4, kind: input, shape index: {}]
  %s5 = inlined_call_operand.hbm [shape: f32[3,128], index: 5, kind: output, shape index: {}]
  %s6 = sld [smem:[#allocation0]]
  $region34: #{tpu_custom_call.1} parent=0
    _
  %s8 = ssub.s32 1, %s6
  %s9 = scalar_select 0, %s8, %s6
  $region1: #{tpu_custom_call.1} parent=0
    #allocation2 [shape = 'u8[10240]{0}', space=vmem, size = 0x2800, scoped, tag = 'input window, operand 1, single buffered']
    #allocation3 [shape = 's32[1]{0}', space=sflag, size = 0x4, scoped, tag = 'scoped memory for tpu_custom_call.1']
    #allocation4 [shape = 's32[1]{0}', space=sflag, size = 0x4, scoped, tag = 'scoped memory for tpu_custom_call.1']
    #allocation5 [shape = 'u8[2048]{0}', space=vmem, size = 0x800, scoped, tag = 'output window, operand 0, single buffered']
    %10 = vsyncpa [#allocation3], 0
    %11 = vsyncpa [#allocation4], 0
    // Predicated region
    $region2: #{tpu_custom_call.1} parent=1 // pred_check
      _
    $region3: #{tpu_custom_call.1} parent=1 // pred_check_branch
      %13 = sbr.rel (0) target = $region5
    $region4: #{tpu_custom_call.1} parent=1 // pred_region
      _
    $region5: #{tpu_custom_call.1} parent=1 // pred_fallthru
      _
    // Predicated region
    $region6: #{tpu_custom_call.1} parent=1 // pred_check
      _
    $region7: #{tpu_custom_call.1} parent=1 // pred_check_branch
      %15 = sbr.rel (0) target = $region9
    $region8: #{tpu_custom_call.1} parent=1 // pred_region
      %17 = vsyncadd [#allocation3], 0
      %s18 = sshll.u32 %s1, 4
      %s19 = int_to_ptr.hbm [resolvable:$true] %s18
      %s20 = sshll.u32 [#allocation2], 4
      %s21 = int_to_ptr.vmem [resolvable:$true] %s20
      %26 = dma.hbm_to_vmem [thread:$0]  %s19, 320, %s21, [#allocation3], 64, 64, 4
    $region9: #{tpu_custom_call.1} parent=1 // pred_fallthru
      _
    // Predicated region
    $region10: #{tpu_custom_call.1} parent=1 // pred_check
      _
    $region11: #{tpu_custom_call.1} parent=1 // pred_check_branch
      %28 = sbr.rel (0) target = $region13
    $region12: #{tpu_custom_call.1} parent=1 // pred_region
      _
    $region13: #{tpu_custom_call.1} parent=1 // pred_fallthru
      _
    // Predicated region
    $region14: #{tpu_custom_call.1} parent=1 // pred_check
      _
    $region15: #{tpu_custom_call.1} parent=1 // pred_check_branch
      %30 = sbr.rel (0) target = $region17
    $region16: #{tpu_custom_call.1} parent=1 // pred_region
      _
    $region17: #{tpu_custom_call.1} parent=1 // pred_fallthru
      _
    // Predicated region
    $region18: #{tpu_custom_call.1} parent=1 // pred_check
      _
    $region19: #{tpu_custom_call.1} parent=1 // pred_check_branch
      %32 = sbr.rel (0) target = $region21
    $region20: #{tpu_custom_call.1} parent=1 // pred_region
      _
    $region21: #{tpu_custom_call.1} parent=1 // pred_fallthru
      _
    // Predicated region
    $region22: #{tpu_custom_call.1} parent=1 // pred_check
      _
    $region23: #{tpu_custom_call.1} parent=1 // pred_check_branch
      %34 = sbr.rel (0) target = $region25
    $region24: #{tpu_custom_call.1} parent=1 // pred_region
      %36 = dma.done [#allocation3], 320
    $region25: #{tpu_custom_call.1} parent=1 // pred_fallthru
      _
    %v38 = vld [vmem:[#allocation2] sm:$0xf]
    %v39 = vld [vmem:[#allocation2 + $0x4] sm:$0xf]
    %v40 = vld [vmem:[#allocation2 + $0x8] sm:$0xf]
    %v41 = vld [vmem:[#allocation2 + $0xc] sm:$0xf]
    %v42 = vld [vmem:[#allocation2 + $0x10] sm:$0x1]
    %v43 = vld [vmem:[%s0] sm:$0xf]
    %v44 = vld [vmem:[%s0 + $0x4] sm:$0xf]
    %v45 = vld [vmem:[%s0 + $0x8] sm:$0xf]
    %v46 = vld [vmem:[%s0 + $0xc] sm:$0xf]
    %v47 = vld [vmem:[%s0 + $0x10] sm:$0xf]
    %v48 = vld [vmem:[%s0 + $0x14] sm:$0xf]
    %v49 = vld [vmem:[%s0 + $0x18] sm:$0xf]
    %v50 = vld [vmem:[%s0 + $0x1c] sm:$0xf]
    %v51 = vld [vmem:[%s2] sm:$0xff]
    %v52 = vld [vmem:[%s2 + $0x8] sm:$0xff]
    %v53 = vld [vmem:[%s2 + $0x10] sm:$0xff]
    %v54 = vld [vmem:[%s2 + $0x18] sm:$0xff]
    %v55 = vld [vmem:[%s2 + $0x20] sm:$0x1]
    %57 = vset.pattern.permute.xlu0 0
    %58 = vperm.xlu0 %57, %v51
    %v59 = vpop.permute.xlu0 %58
    %62 = vset.pattern.permute.xlu0 0
    %63 = vperm.xlu0 %62, %v52
    %v64 = vpop.permute.xlu0 %63
    %67 = vset.pattern.permute.xlu0 0
    %68 = vperm.xlu0 %67, %v53
    %v69 = vpop.permute.xlu0 %68
    %72 = vset.pattern.permute.xlu0 0
    %73 = vperm.xlu0 %72, %v54
    %v74 = vpop.permute.xlu0 %73
    %77 = vset.pattern.permute.xlu0 0
    %78 = vperm.xlu0 %77, %v55
    %v79 = vpop.permute.xlu0 %78
    %v86 = vunpack.c.l.b16 %v38
    %v87 = vunpack.c.l.b16 %v39
    %v88 = vunpack.c.l.b16 %v40
    %v89 = vunpack.c.l.b16 %v41
    %v90 = vunpack.c.l.b16 %v42
    %v91 = vpack.c.b16 %v87, %v86
    %v92 = vpack.c.b16 %v89, %v88
    %v93 = vpack.c.b16 %v90, %v90
    %v102 = vunpack.c.l.b16 %v43
    %v103 = vunpack.c.l.b16 %v44
    %v104 = vunpack.c.l.b16 %v45
    %v105 = vunpack.c.l.b16 %v46
    %v106 = vunpack.c.l.b16 %v47
    %v107 = vunpack.c.l.b16 %v48
    %v108 = vunpack.c.l.b16 %v49
    %v109 = vunpack.c.l.b16 %v50
    %v110 = vpack.c.b16 %v103, %v102
    %v111 = vpack.c.b16 %v105, %v104
    %v112 = vpack.c.b16 %v107, %v106
    %v113 = vpack.c.b16 %v109, %v108
    %vm118 = vcmask 523264
    %v120 = vsel %vm118, %v91, 0
    %v123 = vsel %vm118, %v92, 0
    %v126 = vsel %vm118, %v93, 0
    %128 = vmatpush.bf16.msra.mxu0 0
    %129 = vmatpush.bf16.msra.mxu0 0
    %130 = vmatpush.bf16.msra.mxu0 0
    %131 = vmatpush.bf16.msra.mxu0 0
    %132 = vmatpush.bf16.msra.mxu0 %v113
    %133 = vmatpush.bf16.msra.mxu0 %v112
    %134 = vmatpush.bf16.msra.mxu0 %v111
    %135 = vmatpush.bf16.msra.mxu0 %v110
    %136 = vmatmul.bf16.gmra.mxu0 %v120
    %v137 = vpop.f32.mrf.mxu0
    %v138 = vadd.f32 %v59, %v137
    %v139 = vpop.f32.mrf.mxu0
    %v140 = vadd.f32 %v64, %v139
    %141 = vmatmul.bf16.gmra.mxu0 %v123
    %v142 = vpop.f32.mrf.mxu0
    %v143 = vadd.f32 %v69, %v142
    %v144 = vpop.f32.mrf.mxu0
    %v145 = vadd.f32 %v74, %v144
    %146 = vmatmul.bf16.gmra.mxu0 %v126
    %v147 = vpop.f32.mrf.mxu0
    %v148 = vadd.f32 %v79, %v147
    %v149 = vpop.f32.mrf.mxu0
    %150 = vdwg.mxu0
    %v151 = vmax.f32 %v138, 0.0
    %v152 = vmax.f32 %v140, 0.0
    %v153 = vmax.f32 %v143, 0.0
    %v154 = vmax.f32 %v145, 0.0
    %v155 = vmax.f32 %v148, 0.0
    %vm160 = vcmask 1046528
    %v161 = vrot.slane %v151, 1
    %v162 = vrot.slane %v152, 1
    %v163 = vsel %vm160, %v161, %v162
    %v164 = vrot.slane %v153, 1
    %v165 = vsel %vm160, %v162, %v164
    %v166 = vrot.slane %v154, 1
    %v167 = vsel %vm160, %v164, %v166
    %v172 = vmax.f32 %v151, %v163
    %v173 = vmax.f32 %v152, %v165
    %v174 = vmax.f32 %v153, %v167
    %v175 = vmax.f32 %v154, %v166
    %vm176 = vcmask 1045504
    %v177 = vrot.slane %v151, 2
    %v178 = vrot.slane %v152, 2
    %v179 = vsel %vm176, %v177, %v178
    %v180 = vrot.slane %v153, 2
    %v181 = vsel %vm176, %v178, %v180
    %v182 = vrot.slane %v154, 2
    %v183 = vsel %vm176, %v180, %v182
    %v188 = vmax.f32 %v172, %v179
    %v189 = vmax.f32 %v173, %v181
    %v190 = vmax.f32 %v174, %v183
    %v191 = vmax.f32 %v175, %v182
    %vm192 = vcmask 1044480
    %v193 = vrot.slane %v151, 3
    %v194 = vrot.slane %v152, 3
    %v195 = vsel %vm192, %v193, %v194
    %v196 = vrot.slane %v153, 3
    %v197 = vsel %vm192, %v194, %v196
    %v198 = vrot.slane %v154, 3
    %v199 = vsel %vm192, %v196, %v198
    %v204 = vmax.f32 %v188, %v195
    %v205 = vmax.f32 %v189, %v197
    %v206 = vmax.f32 %v190, %v199
    %v207 = vmax.f32 %v191, %v198
    %vm208 = vcmask 1043456
    %v209 = vrot.slane %v151, 4
    %v210 = vrot.slane %v152, 4
    %v211 = vsel %vm208, %v209, %v210
    %v212 = vrot.slane %v153, 4
    %v213 = vsel %vm208, %v210, %v212
    %v214 = vrot.slane %v154, 4
    %v215 = vsel %vm208, %v212, %v214
    %v220 = vmax.f32 %v204, %v211
    %v221 = vmax.f32 %v205, %v213
    %v222 = vmax.f32 %v206, %v215
    %v223 = vmax.f32 %v207, %v214
    %vm225 = vcmask 1042432
    %v226 = vrot.slane %v151, 5
    %v227 = vrot.slane %v152, 5
    %v228 = vsel %vm225, %v226, %v227
    %v229 = vrot.slane %v153, 5
    %v230 = vsel %vm225, %v227, %v229
    %v231 = vrot.slane %v154, 5
    %v232 = vsel %vm225, %v229, %v231
    %v233 = vrot.slane %v155, 5
    %v234 = vsel %vm225, %v231, %v233
    %v239 = vmax.f32 %v220, %v228
    %v240 = vmax.f32 %v221, %v230
    %v241 = vmax.f32 %v222, %v232
    %v242 = vmax.f32 %v223, %v234
    %v243 = vld [vmem:[%s3] sm:$0x3]
    %v244 = vpack.c.bf16 %v240, %v239
    %v245 = vpack.c.bf16 %v242, %v241
    %v246 = vld [vmem:[%s4] sm:$0x7]
    %248 = vset.pattern.permute.xlu0 0
    %249 = vperm.xlu0 %248, %v246
    %v250 = vpop.permute.xlu0 %249
    %vm252 = vcmask 228352
    %v254 = vsel %vm252, %v243, 0
    %v257 = vsel %vm176, %v245, 0
    %259 = vmatpush.bf16.msra.mxu0 0
    %260 = vmatpush.bf16.msra.mxu0 0
    %261 = vmatpush.bf16.msra.mxu0 0
    %262 = vmatpush.bf16.msra.mxu0 0
    %263 = vmatpush.bf16.msra.mxu0 0
    %264 = vmatpush.bf16.msra.mxu0 0
    %265 = vmatpush.bf16.msra.mxu0 %v257
    %266 = vmatpush.bf16.msra.mxu0 %v244
    %267 = vmatmul.bf16.gmra.mxu0 %v254
    %v268 = vpop.f32.mrf.mxu0
    %v269 = vadd.f32 %v250, %v268
    %v270 = vpop.f32.mrf.mxu0
    %271 = vdwg.mxu0
    %v272 = vsub.f32 0.0, %v269
    %v273 = vmul.f32 %v272, 1.442695
    %v274 = vpow.pop %v273
    %v275 = vadd.f32 %v274, 1.0
    %v276 = vrcp.pop %v275
    %277 = vst [vmem:[#allocation5] sm:$0x7] %v276
    // Predicated region
    $region26: #{tpu_custom_call.1} parent=1 // pred_check
      _
    $region27: #{tpu_custom_call.1} parent=1 // pred_check_branch
      %279 = sbr.rel (0) target = $region29
    $region28: #{tpu_custom_call.1} parent=1 // pred_region
      %281 = vsyncadd [#allocation4], 0
      %s283 = sshll.u32 [#allocation5], 4
      %s284 = int_to_ptr.vmem [resolvable:$true] %s283
      %s285 = sshll.u32 %s5, 4
      %s286 = int_to_ptr.hbm [resolvable:$true] %s285
      %288 = dma.vmem_to_hbm [thread:$0]  %s284, 64, %s286, [#allocation4]
    $region29: #{tpu_custom_call.1} parent=1 // pred_fallthru
      _
    // Predicated region
    $region30: #{tpu_custom_call.1} parent=1 // pred_check
      _
    $region31: #{tpu_custom_call.1} parent=1 // pred_check_branch
      %290 = sbr.rel (0) target = $region33
    $region32: #{tpu_custom_call.1} parent=1 // pred_region
      %292 = dma.done [#allocation4], 64
    $region33: #{tpu_custom_call.1} parent=1 // pred_fallthru
      _
    %293 = vsyncpa [#allocation3], 1
    %294 = vsyncpa [#allocation4], 1

</llo_original>
